<compile_context>
chip_gen: v7x
topology: tpu7x:2x2x1
jax: 0.10.0
libtpu: 0.0.40
codegen_flags: <defaults>
</compile_context>

<pallas_src>
import functools

import jax
import jax.numpy as jnp
from jax import lax
from jax.experimental import pallas as pl
from jax.experimental.pallas import tpu as pltpu


def _vmem_capacity_bytes():
    """Physical VMEM of the local TPU generation (conservative fallback)."""
    try:
        return int(pltpu.get_tpu_info().vmem_capacity_bytes)
    except Exception:
        return 64 * 1024 * 1024  # smallest known per-TC VMEM (v7x)


def _rkd_distance_kernel(s_ref, t_ref, o_ref, *, n_valid):
    """Fused RKD-distance loss.

    s_ref: (Np, Dp) student embeddings (VMEM, native dtype, possibly padded)
    t_ref: (Np, Dp) teacher embeddings (VMEM, native dtype, possibly padded)
    o_ref: (1, 1)   scalar f32 loss    (SMEM)
    n_valid: number of real (unpadded) rows.
    """
    eps = 1e-12
    n_pad = s_ref.shape[0]

    ii = lax.broadcasted_iota(jnp.int32, (n_pad, n_pad), 0)
    jj = lax.broadcasted_iota(jnp.int32, (n_pad, n_pad), 1)
    mask = ii != jj
    if n_valid < n_pad:  # trace-time: only emit row masking when padded rows exist
        mask &= (ii < n_valid) & (jj < n_valid)

    def pdist(e_ref):
        # (Np, Dp) -> (Np, Np) Euclidean distances; diagonal & padded rows/cols -> 0.
        e = e_ref[...]                               # native dtype -> MXU feed
        ef = e.astype(jnp.float32)                   # f32 only for elementwise path
        sq = jnp.sum(ef * ef, axis=1, keepdims=True)                 # (Np, 1) f32
        gram = lax.dot_general(                      # MXU, native-dtype in, f32 acc
            e, e,
            dimension_numbers=(((1,), (1,)), ((), ())),
            preferred_element_type=jnp.float32)
        d2 = jnp.maximum(sq + sq.T - 2.0 * gram, eps)
        return jnp.where(mask, jnp.sqrt(d2), 0.0)

    s_d = pdist(s_ref)
    t_d = pdist(t_ref)

    # Because d2 is clamped to eps, every valid off-diagonal entry is > 0, so
    # mean over positive entries == sum / (n * (n - 1)).  (n == 1 gives the same
    # 0/0 NaN as the PyTorch reference's mean over an empty selection.)
    denom = jnp.float32(n_valid * (n_valid - 1))
    inv_ms = denom / jnp.sum(s_d)
    inv_mt = denom / jnp.sum(t_d)

    # Fold the normalization into the difference (padded/diagonal entries are 0
    # in both matrices, so they contribute exactly 0 to the SmoothL1 sum).
    diff = s_d * inv_ms - t_d * inv_mt
    adiff = jnp.abs(diff)
    elem = jnp.where(adiff < 1.0, 0.5 * diff * diff, adiff - 0.5)

    # SmoothL1Loss(beta=1, reduction='mean') over the real N x N entries.
    o_ref[0, 0] = jnp.sum(elem) / jnp.float32(n_valid * n_valid)


def rkd_distance(student, teacher):
    """RkdDistance.forward(student, teacher) -> scalar f32 loss."""
    assert student.shape == teacher.shape and student.ndim == 2
    n, d = student.shape

    # Lane-pad D to a multiple of 128 (zero columns preserve distances) and
    # sublane-pad N to a multiple of 8 (padded rows masked inside the kernel).
    # Already-aligned inputs skip the pad entirely (no extra HBM traffic).
    d_pad = max(128, ((d + 127) // 128) * 128)
    n_pad = max(8, ((n + 7) // 8) * 8)
    if (n_pad, d_pad) != (n, d):
        pad = ((0, n_pad - n), (0, d_pad - d))
        s = jnp.pad(student, pad)
        t = jnp.pad(teacher, pad)
    else:
        s, t = student, teacher

    # VMEM budget: inputs (double-buffered, native dtype) + f32 upcast temps for
    # the squared-norm path + ~a dozen live N^2 f32 temporaries.
    itemsize = jnp.dtype(student.dtype).itemsize
    vmem_est = (4 * n_pad * d_pad * itemsize
                + 2 * n_pad * d_pad * 4
                + 12 * n_pad * n_pad * 4
                + (2 << 20))
    vmem_cap = _vmem_capacity_bytes() - (16 << 20)  # leave Mosaic scratch headroom
    if vmem_est > vmem_cap:
        # Clamping the limit would not make the N^2 temporaries fit; fail loudly.
        raise NotImplementedError(
            f"RkdDistance fused kernel needs ~{vmem_est >> 20} MiB VMEM but only "
            f"~{vmem_cap >> 20} MiB is available on this TPU generation. "
            "TODO(synk): switch to the tiled two-pass grid described at the top "
            "of this file for large N.")

    kernel = functools.partial(_rkd_distance_kernel, n_valid=n)
    out = pl.pallas_call(
        kernel,
        out_shape=jax.ShapeDtypeStruct((1, 1), jnp.float32),
        in_specs=[
            pl.BlockSpec((n_pad, d_pad), lambda: (0, 0)),
            pl.BlockSpec((n_pad, d_pad), lambda: (0, 0)),
        ],
        out_specs=pl.BlockSpec(memory_space=pltpu.MemorySpace.SMEM),
        compiler_params=pltpu.CompilerParams(vmem_limit_bytes=int(vmem_cap)),
        cost_estimate=pl.CostEstimate(
            flops=2 * (2 * n_pad * n_pad * d_pad),
            transcendentals=2 * n_pad * n_pad,
            bytes_accessed=2 * n_pad * d_pad * itemsize + 4,
        ),
    )(s, t)
    return out[0, 0]


def _ref_loss(s, t):
    """Pure-JAX reference matching the PyTorch module."""
    def ref_pdist(e):
        sq = jnp.sum(e * e, axis=1)
        prod = e @ e.T
        res = jnp.sqrt(jnp.maximum(sq[:, None] + sq[None, :] - 2 * prod, 1e-12))
        return res * (1.0 - jnp.eye(e.shape[0]))

    t_d = ref_pdist(t)
    t_d = t_d / (jnp.sum(jnp.where(t_d > 0, t_d, 0.0)) / jnp.sum(t_d > 0))
    s_d = ref_pdist(s)
    s_d = s_d / (jnp.sum(jnp.where(s_d > 0, s_d, 0.0)) / jnp.sum(s_d > 0))
    diff = s_d - t_d
    a = jnp.abs(diff)
    return jnp.mean(jnp.where(a < 1.0, 0.5 * diff * diff, a - 0.5))


if __name__ == "__main__":
    # RkdDistance has no learnable parameters (SmoothL1Loss is stateless),
    # so there is nothing to initialize beyond the inputs.
    key = jax.random.PRNGKey(0)
    ks, kt, ks2, kt2, ks3, kt3 = jax.random.split(key, 6)

    # Case 1: batch of 8 embeddings, hidden=32 (D padded to 128, no row mask).
    N, D = 8, 32
    student = jax.random.normal(ks, (N, D), dtype=jnp.float32)
    teacher = jax.random.normal(kt, (N, D), dtype=jnp.float32)
    loss = rkd_distance(student, teacher)
    jax.block_until_ready(loss)
    ref = _ref_loss(student, teacher)
    assert jnp.allclose(loss, ref, rtol=1e-5, atol=1e-6), (loss, ref)

    # Case 2: unaligned shapes exercising the N/D padding + row-masking path.
    N2, D2 = 6, 20
    student2 = jax.random.normal(ks2, (N2, D2), dtype=jnp.float32)
    teacher2 = jax.random.normal(kt2, (N2, D2), dtype=jnp.float32)
    loss2 = rkd_distance(student2, teacher2)
    jax.block_until_ready(loss2)
    ref2 = _ref_loss(student2, teacher2)
    assert jnp.allclose(loss2, ref2, rtol=1e-5, atol=1e-6), (loss2, ref2)

    # Case 3: fully (8,128)-aligned shapes exercising the no-pad fast path.
    N3, D3 = 8, 128
    student3 = jax.random.normal(ks3, (N3, D3), dtype=jnp.float32)
    teacher3 = jax.random.normal(kt3, (N3, D3), dtype=jnp.float32)
    loss3 = rkd_distance(student3, teacher3)
    jax.block_until_ready(loss3)
    ref3 = _ref_loss(student3, teacher3)
    assert jnp.allclose(loss3, ref3, rtol=1e-5, atol=1e-6), (loss3, ref3)

    print("KERNEL_OK")
</pallas_src>

<mosaic_0001>
module attributes {stable_mosaic.version = 11 : i64} {
  func.func @_rkd_distance_kernel(%arg0: memref<8x128xf32, #tpu.memory_space<vmem>>, %arg1: memref<8x128xf32, #tpu.memory_space<vmem>>, %arg2: memref<1x1xf32, #tpu.memory_space<smem>>) attributes {dimension_semantics = [], scalar_prefetch = 0 : i64, scratch_operands = 0 : i64, tpu.core_type = #tpu.core_type<tc>} {
    %0 = tpu.iota {dimensions = array<i32: 0>} : vector<8x8xi32>
    %1 = tpu.iota {dimensions = array<i32: 1>} : vector<8x8xi32>
    %2 = arith.cmpi ne, %0, %1 : vector<8x8xi32>
    %c0 = arith.constant 0 : index
    %c0_0 = arith.constant 0 : index
    %3 = vector.load %arg0[%c0, %c0_0] : memref<8x128xf32, #tpu.memory_space<vmem>>, vector<8x128xf32>
    %4 = arith.mulf %3, %3 : vector<8x128xf32>
    %cst = arith.constant dense<0.000000e+00> : vector<8xf32>
    %5 = vector.multi_reduction <add>, %4, %cst [1] : vector<8x128xf32> to vector<8xf32>
    %6 = vector.shape_cast %5 : vector<8xf32> to vector<8x1xf32>
    %cst_1 = arith.constant dense<0.000000e+00> : vector<8x8xf32>
    %7 = tpu.matmul %3, %3, %cst_1 {dimension_numbers = #tpu.dot_dimension_numbers<[1], [1], [0], [0], [0, 0, 1, 0], [], []>} : vector<8x128xf32>, vector<8x128xf32>, vector<8x8xf32> -> vector<8x8xf32>
    %8 = tpu.transpose %6, [1, 0] : vector<8x1xf32> -> vector<1x8xf32>
    %9 = vector.broadcast %6 : vector<8x1xf32> to vector<8x8xf32>
    %10 = vector.broadcast %8 : vector<1x8xf32> to vector<8x8xf32>
    %11 = arith.addf %9, %10 : vector<8x8xf32>
    %cst_2 = arith.constant 2.000000e+00 : f32
    %12 = vector.broadcast %cst_2 : f32 to vector<8x8xf32>
    %13 = arith.mulf %12, %7 : vector<8x8xf32>
    %14 = arith.subf %11, %13 : vector<8x8xf32>
    %cst_3 = arith.constant 9.99999996E-13 : f32
    %15 = vector.broadcast %cst_3 : f32 to vector<8x8xf32>
    %16 = arith.maximumf %14, %15 : vector<8x8xf32>
    %17 = math.sqrt %16 : vector<8x8xf32>
    %cst_4 = arith.constant 0.000000e+00 : f32
    %18 = vector.broadcast %cst_4 : f32 to vector<8x8xf32>
    %19 = arith.select %2, %17, %18 : vector<8x8xi1>, vector<8x8xf32>
    %c0_5 = arith.constant 0 : index
    %c0_6 = arith.constant 0 : index
    %20 = vector.load %arg1[%c0_5, %c0_6] : memref<8x128xf32, #tpu.memory_space<vmem>>, vector<8x128xf32>
    %21 = arith.mulf %20, %20 : vector<8x128xf32>
    %cst_7 = arith.constant dense<0.000000e+00> : vector<8xf32>
    %22 = vector.multi_reduction <add>, %21, %cst_7 [1] : vector<8x128xf32> to vector<8xf32>
    %23 = vector.shape_cast %22 : vector<8xf32> to vector<8x1xf32>
    %cst_8 = arith.constant dense<0.000000e+00> : vector<8x8xf32>
    %24 = tpu.matmul %20, %20, %cst_8 {dimension_numbers = #tpu.dot_dimension_numbers<[1], [1], [0], [0], [0, 0, 1, 0], [], []>} : vector<8x128xf32>, vector<8x128xf32>, vector<8x8xf32> -> vector<8x8xf32>
    %25 = tpu.transpose %23, [1, 0] : vector<8x1xf32> -> vector<1x8xf32>
    %26 = vector.broadcast %23 : vector<8x1xf32> to vector<8x8xf32>
    %27 = vector.broadcast %25 : vector<1x8xf32> to vector<8x8xf32>
    %28 = arith.addf %26, %27 : vector<8x8xf32>
    %cst_9 = arith.constant 2.000000e+00 : f32
    %29 = vector.broadcast %cst_9 : f32 to vector<8x8xf32>
    %30 = arith.mulf %29, %24 : vector<8x8xf32>
    %31 = arith.subf %28, %30 : vector<8x8xf32>
    %cst_10 = arith.constant 9.99999996E-13 : f32
    %32 = vector.broadcast %cst_10 : f32 to vector<8x8xf32>
    %33 = arith.maximumf %31, %32 : vector<8x8xf32>
    %34 = math.sqrt %33 : vector<8x8xf32>
    %cst_11 = arith.constant 0.000000e+00 : f32
    %35 = vector.broadcast %cst_11 : f32 to vector<8x8xf32>
    %36 = arith.select %2, %34, %35 : vector<8x8xi1>, vector<8x8xf32>
    %37 = vector.shape_cast %19 : vector<8x8xf32> to vector<1x8x8xf32>
    %cst_12 = arith.constant dense<0.000000e+00> : vector<1xf32>
    %38 = vector.multi_reduction <add>, %37, %cst_12 [1, 2] : vector<1x8x8xf32> to vector<1xf32>
    %39 = vector.shape_cast %38 : vector<1xf32> to vector<1x1x1xf32>
    %40 = vector.extract %39[0, 0, 0] : f32 from vector<1x1x1xf32>
    %cst_13 = arith.constant 5.600000e+01 : f32
    %41 = arith.divf %cst_13, %40 : f32
    %42 = vector.shape_cast %36 : vector<8x8xf32> to vector<1x8x8xf32>
    %cst_14 = arith.constant dense<0.000000e+00> : vector<1xf32>
    %43 = vector.multi_reduction <add>, %42, %cst_14 [1, 2] : vector<1x8x8xf32> to vector<1xf32>
    %44 = vector.shape_cast %43 : vector<1xf32> to vector<1x1x1xf32>
    %45 = vector.extract %44[0, 0, 0] : f32 from vector<1x1x1xf32>
    %cst_15 = arith.constant 5.600000e+01 : f32
    %46 = arith.divf %cst_15, %45 : f32
    %47 = vector.broadcast %41 : f32 to vector<8x8xf32>
    %48 = arith.mulf %19, %47 : vector<8x8xf32>
    %49 = vector.broadcast %46 : f32 to vector<8x8xf32>
    %50 = arith.mulf %36, %49 : vector<8x8xf32>
    %51 = arith.subf %48, %50 : vector<8x8xf32>
    %52 = math.absf %51 : vector<8x8xf32>
    %cst_16 = arith.constant 1.000000e+00 : f32
    %53 = vector.broadcast %cst_16 : f32 to vector<8x8xf32>
    %54 = arith.cmpf olt, %52, %53 : vector<8x8xf32>
    %cst_17 = arith.constant 5.000000e-01 : f32
    %55 = vector.broadcast %cst_17 : f32 to vector<8x8xf32>
    %56 = arith.mulf %55, %51 : vector<8x8xf32>
    %57 = arith.mulf %56, %51 : vector<8x8xf32>
    %cst_18 = arith.constant 5.000000e-01 : f32
    %58 = vector.broadcast %cst_18 : f32 to vector<8x8xf32>
    %59 = arith.subf %52, %58 : vector<8x8xf32>
    %60 = arith.select %54, %57, %59 : vector<8x8xi1>, vector<8x8xf32>
    %61 = vector.shape_cast %60 : vector<8x8xf32> to vector<1x8x8xf32>
    %cst_19 = arith.constant dense<0.000000e+00> : vector<1xf32>
    %62 = vector.multi_reduction <add>, %61, %cst_19 [1, 2] : vector<1x8x8xf32> to vector<1xf32>
    %63 = vector.shape_cast %62 : vector<1xf32> to vector<1x1x1xf32>
    %64 = vector.extract %63[0, 0, 0] : f32 from vector<1x1x1xf32>
    %cst_20 = arith.constant 6.400000e+01 : f32
    %65 = arith.divf %64, %cst_20 : f32
    %c0_21 = arith.constant 0 : index
    %c0_22 = arith.constant 0 : index
    %66 = memref.load %arg2[%c0_21, %c0_22] : memref<1x1xf32, #tpu.memory_space<smem>>
    memref.store %65, %arg2[%c0_21, %c0_22] : memref<1x1xf32, #tpu.memory_space<smem>>
    return
  }
}

</mosaic_0001>

<llo_original>
// kernel: tpu_custom_call.1
$region0: #{tpu_custom_call.1}
  #allocation0 [shape = 'u32[]', space=smem, size = 0x4, offset = 0x4, fixed_abs, tag = 'smem constant byte address 0x4 - core index']
  #allocation1 [shape = 'u32[144,128]{1,0:T(1,128)}', space=vmem, size = 0x12000, scoped, tag = 'internal scratch']
  %s0 = inlined_call_operand.hbm [shape: f32[8,128], index: 0, kind: input, shape index: {}]
  %s1 = inlined_call_operand.hbm [shape: f32[8,128], index: 1, kind: input, shape index: {}]
  %s2 = inlined_call_operand.hbm [shape: f32[1,1], index: 2, kind: output, shape index: {}]
  %s3 = sld [smem:[#allocation0]]
  $region26: #{tpu_custom_call.1} parent=0
    _
  %s5 = ssub.s32 1, %s3
  %s6 = scalar_select 0, %s5, %s3
  $region1: #{tpu_custom_call.1} parent=0
    #allocation2 [shape = 'u8[4096]{0}', space=vmem, size = 0x1000, scoped, tag = 'input window, operand 0, single buffered']
    #allocation3 [shape = 's32[1]{0}', space=sflag, size = 0x4, scoped, tag = 'scoped memory for tpu_custom_call.1']
    #allocation4 [shape = 's32[1]{0}', space=sflag, size = 0x4, scoped, tag = 'scoped memory for tpu_custom_call.1']
    #allocation5 [shape = 'u8[4096]{0}', space=vmem, size = 0x1000, scoped, tag = 'input window, operand 1, single buffered']
    #allocation6 [shape = 's32[1]{0}', space=sflag, size = 0x4, scoped, tag = 'scoped memory for tpu_custom_call.1']
    #allocation7 [shape = 'u8[512]{0}', space=smem, size = 0x200, scoped, tag = 'output window, operand 0, single buffered']
    %7 = vsyncpa [#allocation3], 0
    %8 = vsyncpa [#allocation6], 0
    %9 = vsyncpa [#allocation4], 0
    // Predicated region
    $region2: #{tpu_custom_call.1} parent=1 // pred_check
      _
    $region3: #{tpu_custom_call.1} parent=1 // pred_check_branch
      %11 = sbr.rel (0) target = $region5
    $region4: #{tpu_custom_call.1} parent=1 // pred_region
      %s13 = ssub.s32 128, 128
      %14 = vsyncadd [#allocation3], %s13
      %s16 = sshll.u32 [#allocation2], 4
      %s17 = int_to_ptr.vmem [resolvable:$true] %s16
      %19 = dma.hbm_to_vmem [thread:$0]  %s0, 128, %s17, [#allocation3]
    $region5: #{tpu_custom_call.1} parent=1 // pred_fallthru
      _
    // Predicated region
    $region6: #{tpu_custom_call.1} parent=1 // pred_check
      _
    $region7: #{tpu_custom_call.1} parent=1 // pred_check_branch
      %21 = sbr.rel (0) target = $region9
    $region8: #{tpu_custom_call.1} parent=1 // pred_region
      %s23 = ssub.s32 128, 128
      %24 = vsyncadd [#allocation6], %s23
      %s26 = sshll.u32 [#allocation5], 4
      %s27 = int_to_ptr.vmem [resolvable:$true] %s26
      %29 = dma.hbm_to_vmem [thread:$0]  %s1, 128, %s27, [#allocation6]
    $region9: #{tpu_custom_call.1} parent=1 // pred_fallthru
      _
    // Predicated region
    $region10: #{tpu_custom_call.1} parent=1 // pred_check
      _
    $region11: #{tpu_custom_call.1} parent=1 // pred_check_branch
      %31 = sbr.rel (0) target = $region13
    $region12: #{tpu_custom_call.1} parent=1 // pred_region
      %32 = dma.done [#allocation3], 128
    $region13: #{tpu_custom_call.1} parent=1 // pred_fallthru
      _
    // Predicated region
    $region14: #{tpu_custom_call.1} parent=1 // pred_check
      _
    $region15: #{tpu_custom_call.1} parent=1 // pred_check_branch
      %34 = sbr.rel (0) target = $region17
    $region16: #{tpu_custom_call.1} parent=1 // pred_region
      %35 = dma.done [#allocation6], 128
    $region17: #{tpu_custom_call.1} parent=1 // pred_fallthru
      _
    %v36 = vlaneseq
    %v37 = vshrl.u32 %v36, 7
    %v38 = vlaneseq
    %v39 = vand.u32 %v38, 127
    %vm40 = vcmp.ne.s32.totalorder %v37, %v39
    %v41 = vld [vmem:[#allocation2] sm:$0xff]
    %v42 = vmul.f32 %v41, %v41
    %43 = vadd.xlane.f32.xlu0 %v42
    %v44 = vpop.xlane.xlu0 %43
    %45 = vmatprep.subr.mxu0 0.0
    %46 = vmatpush1.xpose.msra.mxu0 %v41
    %47 = vmatprep.subr.mxu0 0.0
    %48 = vmatpush1.xpose.msra.mxu0 0.0
    %49 = vmatprep.subr.mxu0 0.0
    %50 = vmatpush1.xpose.msra.mxu0 0.0
    %51 = vmatprep.subr.mxu0 0.0
    %52 = vmatpush1.xpose.msra.mxu0 0.0
    %53 = vmatprep.subr.mxu0 0.0
    %54 = vmatpush1.xpose.msra.mxu0 0.0
    %55 = vmatprep.subr.mxu0 0.0
    %56 = vmatpush1.xpose.msra.mxu0 0.0
    %57 = vmatprep.subr.mxu0 0.0
    %58 = vmatpush1.xpose.msra.mxu0 0.0
    %59 = vmatprep.subr.mxu0 0.0
    %60 = vmatpush1.xpose.msra.mxu0 0.0
    %61 = vmatprep.subr.mxu0 0.0
    %62 = vmatpush1.xpose.msra.mxu0 0.0
    %63 = vmatprep.subr.mxu0 0.0
    %64 = vmatpush1.xpose.msra.mxu0 0.0
    %65 = vmatprep.subr.mxu0 0.0
    %66 = vmatpush1.xpose.msra.mxu0 0.0
    %67 = vmatprep.subr.mxu0 0.0
    %68 = vmatpush1.xpose.msra.mxu0 0.0
    %69 = vmatprep.subr.mxu0 0.0
    %70 = vmatpush1.xpose.msra.mxu0 0.0
    %71 = vmatprep.subr.mxu0 0.0
    %72 = vmatpush1.xpose.msra.mxu0 0.0
    %73 = vmatprep.subr.mxu0 0.0
    %74 = vmatpush1.xpose.msra.mxu0 0.0
    %75 = vmatprep.subr.mxu0 0.0
    %76 = vmatpush1.xpose.msra.mxu0 0.0
    %77 = vmatprep.subr.mxu0 0.0
    %78 = vmatpush1.xpose.msra.mxu0 0.0
    %79 = vmatprep.subr.mxu0 0.0
    %80 = vmatpush1.xpose.msra.mxu0 0.0
    %81 = vmatprep.subr.mxu0 0.0
    %82 = vmatpush1.xpose.msra.mxu0 0.0
    %83 = vmatprep.subr.mxu0 0.0
    %84 = vmatpush1.xpose.msra.mxu0 0.0
    %85 = vmatprep.subr.mxu0 0.0
    %86 = vmatpush1.xpose.msra.mxu0 0.0
    %87 = vmatprep.subr.mxu0 0.0
    %88 = vmatpush1.xpose.msra.mxu0 0.0
    %89 = vmatprep.subr.mxu0 0.0
    %90 = vmatpush1.xpose.msra.mxu0 0.0
    %91 = vmatprep.subr.mxu0 0.0
    %92 = vmatpush1.xpose.msra.mxu0 0.0
    %93 = vmatprep.subr.mxu0 0.0
    %94 = vmatpush1.xpose.msra.mxu0 0.0
    %95 = vmatprep.subr.mxu0 0.0
    %96 = vmatpush1.xpose.msra.mxu0 0.0
    %97 = vmatprep.subr.mxu0 0.0
    %98 = vmatpush1.xpose.msra.mxu0 0.0
    %99 = vmatprep.subr.mxu0 0.0
    %100 = vmatpush1.xpose.msra.mxu0 0.0
    %101 = vmatprep.subr.mxu0 0.0
    %102 = vmatpush1.xpose.msra.mxu0 0.0
    %103 = vmatprep.subr.mxu0 0.0
    %104 = vmatpush1.xpose.msra.mxu0 0.0
    %105 = vmatprep.subr.mxu0 0.0
    %106 = vmatpush1.xpose.msra.mxu0 0.0
    %107 = vmatprep.subr.mxu0 0.0
    %108 = vmatpush1.xpose.msra.mxu0 0.0
    %109 = vmatprep.mubr.f32.mxu0 0.0
    %110 = vmatmul.mubr.f32.gmra.mrb[0].mxu0 %v41
    %v111 = vpop.f32.mrb[0].mxu0
    %v112 = vadd.f32 0.0, %v111
    %v113 = vpop.f32.mrb[0].mxu0
    %114 = vdwg.mxu0
    %115 = vxpose.xlu0.b32.start [1/16] %v44, 128
    %116 = vxpose.xlu0.b32.cont [2/16] 0.0, 128
    %117 = vxpose.xlu0.b32.cont [3/16] 0.0, 128
    %118 = vxpose.xlu0.b32.cont [4/16] 0.0, 128
    %119 = vxpose.xlu0.b32.cont [5/16] 0.0, 128
    %120 = vxpose.xlu0.b32.cont [6/16] 0.0, 128
    %121 = vxpose.xlu0.b32.cont [7/16] 0.0, 128
    %122 = vxpose.xlu0.b32.cont [8/16] 0.0, 128
    %123 = vxpose.xlu0.b32.cont [9/16] 0.0, 128
    %124 = vxpose.xlu0.b32.cont [10/16] 0.0, 128
    %125 = vxpose.xlu0.b32.cont [11/16] 0.0, 128
    %126 = vxpose.xlu0.b32.cont [12/16] 0.0, 128
    %127 = vxpose.xlu0.b32.cont [13/16] 0.0, 128
    %128 = vxpose.xlu0.b32.cont [14/16] 0.0, 128
    %129 = vxpose.xlu0.b32.cont [15/16] 0.0, 128
    %130 = vxpose.xlu0.b32.end [16/16] 0.0, 128
    %v131 = vpop.trf.xlu0
    %v132 = vpop.trf.xlu0
    %v133 = vpop.trf.xlu0
    %v134 = vpop.trf.xlu0
    %v135 = vpop.trf.xlu0
    %v136 = vpop.trf.xlu0
    %v137 = vpop.trf.xlu0
    %v138 = vpop.trf.xlu0
    %v139 = vpop.trf.xlu0
    %v140 = vpop.trf.xlu0
    %v141 = vpop.trf.xlu0
    %v142 = vpop.trf.xlu0
    %v143 = vpop.trf.xlu0
    %v144 = vpop.trf.xlu0
    %v145 = vpop.trf.xlu0
    %v146 = vpop.trf.xlu0
    %v147 = vlaneseq
    %v148 = vshrl.u32 %v147, 7
    %v149 = vsub.s32 0, %v148
    %v150 = vrot.slane %v131, %v149
    %v151 = vadd.f32 %v44, %v150
    %v152 = vmul.f32 %v112, 2.0
    %v153 = vsub.f32 %v151, %v152
    %v154 = vmax.f32 %v153, 1e-12
    %v155 = vrsqrt.pop %v154
    %v156 = vmul.f32 %v154, %v155
    %vm157 = vcmp.eq.f32.partialorder %v154, inf
    %v158 = vsel %vm157, %v154, %v156
    %vm159 = vcmp.eq.f32.partialorder %v154, 0.0
    %v160 = vand.u32 %v154, 2147483648
    %v161 = vsel %vm159, %v160, %v158
    %v162 = vsel %vm40, %v161, 0.0
    %v163 = vld [vmem:[#allocation5] sm:$0xff]
    %v164 = vmul.f32 %v163, %v163
    %165 = vadd.xlane.f32.xlu0 %v164
    %v166 = vpop.xlane.xlu0 %165
    %167 = vmatprep.subr.mxu0 0.0
    %168 = vmatpush1.xpose.msra.mxu0 %v163
    %169 = vmatprep.subr.mxu0 0.0
    %170 = vmatpush1.xpose.msra.mxu0 0.0
    %171 = vmatprep.subr.mxu0 0.0
    %172 = vmatpush1.xpose.msra.mxu0 0.0
    %173 = vmatprep.subr.mxu0 0.0
    %174 = vmatpush1.xpose.msra.mxu0 0.0
    %175 = vmatprep.subr.mxu0 0.0
    %176 = vmatpush1.xpose.msra.mxu0 0.0
    %177 = vmatprep.subr.mxu0 0.0
    %178 = vmatpush1.xpose.msra.mxu0 0.0
    %179 = vmatprep.subr.mxu0 0.0
    %180 = vmatpush1.xpose.msra.mxu0 0.0
    %181 = vmatprep.subr.mxu0 0.0
    %182 = vmatpush1.xpose.msra.mxu0 0.0
    %183 = vmatprep.subr.mxu0 0.0
    %184 = vmatpush1.xpose.msra.mxu0 0.0
    %185 = vmatprep.subr.mxu0 0.0
    %186 = vmatpush1.xpose.msra.mxu0 0.0
    %187 = vmatprep.subr.mxu0 0.0
    %188 = vmatpush1.xpose.msra.mxu0 0.0
    %189 = vmatprep.subr.mxu0 0.0
    %190 = vmatpush1.xpose.msra.mxu0 0.0
    %191 = vmatprep.subr.mxu0 0.0
    %192 = vmatpush1.xpose.msra.mxu0 0.0
    %193 = vmatprep.subr.mxu0 0.0
    %194 = vmatpush1.xpose.msra.mxu0 0.0
    %195 = vmatprep.subr.mxu0 0.0
    %196 = vmatpush1.xpose.msra.mxu0 0.0
    %197 = vmatprep.subr.mxu0 0.0
    %198 = vmatpush1.xpose.msra.mxu0 0.0
    %199 = vmatprep.subr.mxu0 0.0
    %200 = vmatpush1.xpose.msra.mxu0 0.0
    %201 = vmatprep.subr.mxu0 0.0
    %202 = vmatpush1.xpose.msra.mxu0 0.0
    %203 = vmatprep.subr.mxu0 0.0
    %204 = vmatpush1.xpose.msra.mxu0 0.0
    %205 = vmatprep.subr.mxu0 0.0
    %206 = vmatpush1.xpose.msra.mxu0 0.0
    %207 = vmatprep.subr.mxu0 0.0
    %208 = vmatpush1.xpose.msra.mxu0 0.0
    %209 = vmatprep.subr.mxu0 0.0
    %210 = vmatpush1.xpose.msra.mxu0 0.0
    %211 = vmatprep.subr.mxu0 0.0
    %212 = vmatpush1.xpose.msra.mxu0 0.0
    %213 = vmatprep.subr.mxu0 0.0
    %214 = vmatpush1.xpose.msra.mxu0 0.0
    %215 = vmatprep.subr.mxu0 0.0
    %216 = vmatpush1.xpose.msra.mxu0 0.0
    %217 = vmatprep.subr.mxu0 0.0
    %218 = vmatpush1.xpose.msra.mxu0 0.0
    %219 = vmatprep.subr.mxu0 0.0
    %220 = vmatpush1.xpose.msra.mxu0 0.0
    %221 = vmatprep.subr.mxu0 0.0
    %222 = vmatpush1.xpose.msra.mxu0 0.0
    %223 = vmatprep.subr.mxu0 0.0
    %224 = vmatpush1.xpose.msra.mxu0 0.0
    %225 = vmatprep.subr.mxu0 0.0
    %226 = vmatpush1.xpose.msra.mxu0 0.0
    %227 = vmatprep.subr.mxu0 0.0
    %228 = vmatpush1.xpose.msra.mxu0 0.0
    %229 = vmatprep.subr.mxu0 0.0
    %230 = vmatpush1.xpose.msra.mxu0 0.0
    %231 = vmatprep.mubr.f32.mxu0 0.0
    %232 = vmatmul.mubr.f32.gmra.mrb[0].mxu0 %v163
    %v233 = vpop.f32.mrb[0].mxu0
    %v234 = vadd.f32 0.0, %v233
    %v235 = vpop.f32.mrb[0].mxu0
    %236 = vdwg.mxu0
    %237 = vxpose.xlu0.b32.start [1/16] %v166, 128
    %238 = vxpose.xlu0.b32.cont [2/16] 0.0, 128
    %239 = vxpose.xlu0.b32.cont [3/16] 0.0, 128
    %240 = vxpose.xlu0.b32.cont [4/16] 0.0, 128
    %241 = vxpose.xlu0.b32.cont [5/16] 0.0, 128
    %242 = vxpose.xlu0.b32.cont [6/16] 0.0, 128
    %243 = vxpose.xlu0.b32.cont [7/16] 0.0, 128
    %244 = vxpose.xlu0.b32.cont [8/16] 0.0, 128
    %245 = vxpose.xlu0.b32.cont [9/16] 0.0, 128
    %246 = vxpose.xlu0.b32.cont [10/16] 0.0, 128
    %247 = vxpose.xlu0.b32.cont [11/16] 0.0, 128
    %248 = vxpose.xlu0.b32.cont [12/16] 0.0, 128
    %249 = vxpose.xlu0.b32.cont [13/16] 0.0, 128
    %250 = vxpose.xlu0.b32.cont [14/16] 0.0, 128
    %251 = vxpose.xlu0.b32.cont [15/16] 0.0, 128
    %252 = vxpose.xlu0.b32.end [16/16] 0.0, 128
    %v253 = vpop.trf.xlu0
    %v254 = vpop.trf.xlu0
    %v255 = vpop.trf.xlu0
    %v256 = vpop.trf.xlu0
    %v257 = vpop.trf.xlu0
    %v258 = vpop.trf.xlu0
    %v259 = vpop.trf.xlu0
    %v260 = vpop.trf.xlu0
    %v261 = vpop.trf.xlu0
    %v262 = vpop.trf.xlu0
    %v263 = vpop.trf.xlu0
    %v264 = vpop.trf.xlu0
    %v265 = vpop.trf.xlu0
    %v266 = vpop.trf.xlu0
    %v267 = vpop.trf.xlu0
    %v268 = vpop.trf.xlu0
    %v269 = vlaneseq
    %v270 = vshrl.u32 %v269, 7
    %v271 = vsub.s32 0, %v270
    %v272 = vrot.slane %v253, %v271
    %v273 = vadd.f32 %v166, %v272
    %v274 = vmul.f32 %v234, 2.0
    %v275 = vsub.f32 %v273, %v274
    %v276 = vmax.f32 %v275, 1e-12
    %v277 = vrsqrt.pop %v276
    %v278 = vmul.f32 %v276, %v277
    %vm279 = vcmp.eq.f32.partialorder %v276, inf
    %v280 = vsel %vm279, %v276, %v278
    %vm281 = vcmp.eq.f32.partialorder %v276, 0.0
    %v282 = vand.u32 %v276, 2147483648
    %v283 = vsel %vm281, %v282, %v280
    %v284 = vsel %vm40, %v283, 0.0
    %vm285 = vcmask 64512
    %v286 = vsel %vm285, %v162, 0.0
    %287 = vadd.xlane.f32.xlu0 %v286
    %v288 = vpop.xlane.xlu0 %287
    %v289 = vrot.slane %v288, 4
    %v290 = vadd.f32 %v288, %v289
    %v291 = vrot.slane %v290, 2
    %v292 = vadd.f32 %v290, %v291
    %v293 = vrot.slane %v292, 1
    %v294 = vadd.f32 %v292, %v293
    %s295 = vtos %v294
    %v296 = vstv %s295
    %v297 = vrcp.pop %v296
    %s298 = vtos %v297
    %s299 = smul.f32 56.0, %s298
    %v300 = vsel %vm285, %v284, 0.0
    %301 = vadd.xlane.f32.xlu0 %v300
    %v302 = vpop.xlane.xlu0 %301
    %v303 = vrot.slane %v302, 4
    %v304 = vadd.f32 %v302, %v303
    %v305 = vrot.slane %v304, 2
    %v306 = vadd.f32 %v304, %v305
    %v307 = vrot.slane %v306, 1
    %v308 = vadd.f32 %v306, %v307
    %s309 = vtos %v308
    %v310 = vstv %s309
    %v311 = vrcp.pop %v310
    %s312 = vtos %v311
    %s313 = smul.f32 56.0, %s312
    %v314 = vstv %s299
    %v315 = vmul.f32 %v162, %v314
    %v316 = vstv %s313
    %v317 = vmul.f32 %v284, %v316
    %v318 = vsub.f32 %v315, %v317
    %v319 = vand.u32 2147483647, %v318
    %vm320 = vcmp.lt.f32.partialorder %v319, 1.0
    %v321 = vmul.f32 %v318, 0.5
    %v322 = vmul.f32 %v321, %v318
    %v323 = vsub.f32 %v319, 0.5
    %v324 = vsel %vm320, %v322, %v323
    %v325 = vsel %vm285, %v324, 0.0
    %326 = vadd.xlane.f32.xlu0 %v325
    %v327 = vpop.xlane.xlu0 %326
    %v328 = vrot.slane %v327, 4
    %v329 = vadd.f32 %v327, %v328
    %v330 = vrot.slane %v329, 2
    %v331 = vadd.f32 %v329, %v330
    %v332 = vrot.slane %v331, 1
    %v333 = vadd.f32 %v331, %v332
    %s334 = vtos %v333
    %v335 = vrcp.pop 64.0
    %s336 = vtos %v335
    %s337 = smul.f32 %s334, %s336
    %s338 = scalar_lea.smem [#allocation7], 0
    %339 = sst [smem:[%s338]] %s337
    // Predicated region
    $region18: #{tpu_custom_call.1} parent=1 // pred_check
      _
    $region19: #{tpu_custom_call.1} parent=1 // pred_check_branch
      %341 = sbr.rel (0) target = $region21
    $region20: #{tpu_custom_call.1} parent=1 // pred_region
      %s343 = ssub.s32 16, 16
      %344 = vsyncadd [#allocation4], %s343
      %347 = dma.smem_to_hbm [#allocation7], 16, %s2, [#allocation4]
    $region21: #{tpu_custom_call.1} parent=1 // pred_fallthru
      _
    // Predicated region
    $region22: #{tpu_custom_call.1} parent=1 // pred_check
      _
    $region23: #{tpu_custom_call.1} parent=1 // pred_check_branch
      %349 = sbr.rel (0) target = $region25
    $region24: #{tpu_custom_call.1} parent=1 // pred_region
      %350 = dma.done [#allocation4], 16
    $region25: #{tpu_custom_call.1} parent=1 // pred_fallthru
      _
    %351 = sfence
    %352 = vsyncpa [#allocation3], 1
    %353 = vsyncpa [#allocation6], 1
    %354 = vsyncpa [#allocation4], 1

</llo_original>
